<compile_context>
chip_gen: v5e
topology: v5e:2x2
jax: 0.10.0
libtpu: 0.0.40
codegen_flags: <defaults>
</compile_context>

<pallas_src>
import jax
import jax.numpy as jnp
from jax.experimental import pallas as pl
from jax.experimental.pallas import tpu as pltpu

_LANE = 128
_SUB = 8


def _round_up(x, m):
    return ((x + m - 1) // m) * m


def _vmem_capacity_bytes():
    try:
        return int(pltpu.get_tpu_info().vmem_capacity_bytes)
    except Exception:
        return 64 * 1024 * 1024  # conservative (v7x-sized) fallback


def _per_lane_vmem_bytes(B, Cout, Ctar):
    """Upper bound on VMEM bytes consumed per lane-column of hw_tile."""
    cout_p = _round_up(Cout, _SUB)
    ctar_p = _round_up(Ctar, _SUB)
    # Double-buffered input blocks (4 B/elem is an upper bound both for f32
    # (pad-to-8 sublanes) and bf16 (pad-to-16 sublanes at 2 B)) ...
    dbuf_inputs = 2 * B * (cout_p + ctar_p) * 4
    # ... plus in-kernel temporaries: masked copies of out/tar, tar*tar and
    # the f32 cast used by the S reduction.
    temporaries = B * (2 * cout_p + 3 * ctar_p) * 4
    return dbuf_inputs + temporaries


def _pick_hw_tile(HW, B, Cout, Ctar, requested=None):
    """Generation-aware tile size + scoped-VMEM limit."""
    vmem_cap = _vmem_capacity_bytes()
    # <= 48 MiB scoped on v7x (64 MiB physical); up to 96 MiB on v5e/v6e (128 MiB).
    vmem_budget = min(vmem_cap * 3 // 4, 96 * 1024 * 1024)
    reserve = 2 * 1024 * 1024  # tiny accumulator outputs, semaphores, misc
    hw_ceil = _round_up(HW, _LANE)
    if requested is not None:
        hw_tile = min(_round_up(requested, _LANE), hw_ceil)
    else:
        max_lanes = max(
            (vmem_budget - reserve) // _per_lane_vmem_bytes(B, Cout, Ctar), _LANE)
        hw_tile = min((max_lanes // _LANE) * _LANE, hw_ceil)
    return max(hw_tile, _LANE), vmem_budget


def _make_kernel(HW, hw_tile, tiles_per_chunk, ragged):
    def kernel(out_ref, tar_ref, pN_ref, pA_ref, pS_ref):
        k = pl.program_id(1)

        @pl.when(k == 0)
        def _init():
            pN_ref[...] = jnp.zeros_like(pN_ref)
            pA_ref[...] = jnp.zeros_like(pA_ref)
            pS_ref[...] = jnp.zeros_like(pS_ref)

        out = out_ref[...]            # (B, Cout, hw_tile), native dtype
        tar = tar_ref[...]            # (B, Ctar, hw_tile), native dtype

        if ragged:
            # Mask lanes past the true HW extent: covers the partially valid
            # last tile and any fully out-of-range clamped tile. Masking BOTH
            # operands keeps S exact and stops garbage lanes reaching any
            # accumulator.
            g = pl.program_id(0) * tiles_per_chunk + k
            valid = HW - g * hw_tile
            lane = jax.lax.broadcasted_iota(jnp.int32, (1, 1, hw_tile), 2)
            keep = lane < valid
            out = jnp.where(keep, out, 0)
            tar = jnp.where(keep, tar, 0)

        # HW contractions on the MXU with f32 accumulation; operands stay in
        # their native dtype (bf16 feeds the MXU directly).
        pN_ref[...] += jnp.einsum('bth,bch->btc', tar, out,
                                  preferred_element_type=jnp.float32)[None]
        pA_ref[...] += jnp.einsum('bth,bch->btc', tar * tar, out,
                                  preferred_element_type=jnp.float32)[None]
        pS_ref[...] += jnp.sum(out.astype(jnp.float32), axis=-1)[None]

    return kernel


def levelset_loss(output, target, *, hw_tile=None):
    """output: (B, Cout, H, W); target: (B, Ctar, H, W) -> scalar f32 loss."""
    B, Cout, H, W = output.shape
    Bt, Ctar, Ht, Wt = target.shape
    assert (B, H, W) == (Bt, Ht, Wt), "batch / spatial dims must match"

    HW = H * W
    hw_tile, vmem_limit = _pick_hw_tile(HW, B, Cout, Ctar, hw_tile)

    n_tiles = pl.cdiv(HW, hw_tile)
    # Two "parallel" chunks: on dual-TensorCore chips (v7x) each chunk runs on
    # its own core; on single-core chips the extra chunk is essentially free.
    n_chunks = 2 if n_tiles >= 2 else 1
    tiles_per_chunk = pl.cdiv(n_tiles, n_chunks)
    padded_tiles = n_chunks * tiles_per_chunk
    ragged = (padded_tiles * hw_tile != HW)

    # Flatten HW onto the lane axis (metadata-only reshape; no jnp.pad copy).
    out_flat = output.reshape(B, Cout, HW)
    tar_flat = target.reshape(B, Ctar, HW)

    last_blk = n_tiles - 1
    if padded_tiles == n_tiles:
        def hw_idx(c, k):
            return c * tiles_per_chunk + k
    else:
        # Clamp over-shot tiles onto the last real block; the kernel masks
        # their contribution to zero.
        def hw_idx(c, k):
            return jnp.minimum(c * tiles_per_chunk + k, last_blk)

    kernel = _make_kernel(HW, hw_tile, tiles_per_chunk, ragged)

    bytes_accessed = (out_flat.size * output.dtype.itemsize
                      + tar_flat.size * target.dtype.itemsize
                      + 4 * n_chunks * B * (2 * Ctar * Cout + Cout))
    flops = B * HW * (4 * Ctar * Cout + Ctar + Cout)

    pN, pA, pS = pl.pallas_call(
        kernel,
        out_shape=(
            jax.ShapeDtypeStruct((n_chunks, B, Ctar, Cout), jnp.float32),
            jax.ShapeDtypeStruct((n_chunks, B, Ctar, Cout), jnp.float32),
            jax.ShapeDtypeStruct((n_chunks, B, Cout), jnp.float32),
        ),
        grid=(n_chunks, tiles_per_chunk),
        in_specs=[
            pl.BlockSpec((B, Cout, hw_tile), lambda c, k: (0, 0, hw_idx(c, k))),
            pl.BlockSpec((B, Ctar, hw_tile), lambda c, k: (0, 0, hw_idx(c, k))),
        ],
        out_specs=(
            pl.BlockSpec((1, B, Ctar, Cout), lambda c, k: (c, 0, 0, 0)),
            pl.BlockSpec((1, B, Ctar, Cout), lambda c, k: (c, 0, 0, 0)),
            pl.BlockSpec((1, B, Cout), lambda c, k: (c, 0, 0)),
        ),
        compiler_params=pltpu.CompilerParams(
            dimension_semantics=("parallel", "arbitrary"),
            vmem_limit_bytes=int(vmem_limit)),
        cost_estimate=pl.CostEstimate(
            flops=flops, transcendentals=0, bytes_accessed=bytes_accessed),
    )(out_flat, tar_flat)

    # Tiny epilogue in plain JAX (kernel stays epilogue-free so the per-chunk
    # partials can come from different TensorCores).
    N = jnp.sum(pN, axis=0)                 # (B, Ctar, Cout)
    A = jnp.sum(pA, axis=0)
    S = jnp.sum(pS, axis=0)                 # (B, Cout)
    T = jnp.sum(S)                          # torch.sum(output)
    # NOTE: matches PyTorch semantics — no guard against T == 0 (inf/nan then).
    p = N / T                               # pcentroid[b, t, c]
    loss = jnp.sum(A - 2.0 * p * N + (p * p) * S[:, None, :])
    return loss


def _reference_loss(output, target):
    """Pure-JAX port of the PyTorch forward, for verification."""
    B, Cout, H, W = output.shape
    Ctar = target.shape[1]
    total = jnp.sum(output)
    loss = 0.0
    for ich in range(Ctar):
        t = target[:, ich][:, None, :, :]                     # (B,1,H,W)
        t = jnp.broadcast_to(t, (B, Cout, H, W))
        pcent = jnp.sum(t * output, axis=(2, 3)) / total      # (B,Cout)
        pcent = pcent[:, :, None, None]
        plevel = t - pcent
        loss = loss + jnp.sum(plevel * plevel * output)
    return loss


if __name__ == "__main__":
    key = jax.random.PRNGKey(0)
    k1, k2, k3, k4 = jax.random.split(key, 4)

    # Case 1: HW divides the tile grid exactly (2 chunks x 1 tile of 128 lanes).
    out1 = jax.random.uniform(k1, (2, 4, 16, 16), dtype=jnp.float32)
    tar1 = jax.random.uniform(k2, (2, 3, 16, 16), dtype=jnp.float32)
    loss1 = levelset_loss(out1, tar1, hw_tile=128)
    jax.block_until_ready(loss1)
    ref1 = _reference_loss(out1, tar1)
    assert jnp.allclose(loss1, ref1, rtol=1e-4, atol=1e-4), (loss1, ref1)

    # Case 2: ragged HW (18*18 = 324 lanes -> 3 real tiles over 2 chunks),
    # exercising the in-kernel mask and the clamped over-shot tile.
    out2 = jax.random.uniform(k3, (2, 4, 18, 18), dtype=jnp.float32)
    tar2 = jax.random.uniform(k4, (2, 3, 18, 18), dtype=jnp.float32)
    loss2 = levelset_loss(out2, tar2, hw_tile=128)
    jax.block_until_ready(loss2)
    ref2 = _reference_loss(out2, tar2)
    assert jnp.allclose(loss2, ref2, rtol=1e-4, atol=1e-4), (loss2, ref2)

    # Case 3: automatic (generation-aware) tile selection.
    loss3 = levelset_loss(out1, tar1)
    jax.block_until_ready(loss3)
    assert jnp.allclose(loss3, ref1, rtol=1e-4, atol=1e-4), (loss3, ref1)

    print("KERNEL_OK")
</pallas_src>

<mosaic_0001>
module attributes {stable_mosaic.version = 11 : i64} {
  func.func @kernel(%arg0: i32, %arg1: i32, %arg2: memref<2x4x128xf32, #tpu.memory_space<vmem>>, %arg3: memref<2x3x128xf32, #tpu.memory_space<vmem>>, %arg4: memref<1x2x3x4xf32, #tpu.memory_space<vmem>>, %arg5: memref<1x2x3x4xf32, #tpu.memory_space<vmem>>, %arg6: memref<1x2x4xf32, #tpu.memory_space<vmem>>) attributes {dimension_semantics = [#tpu.dimension_semantics<parallel>, #tpu.dimension_semantics<arbitrary>], iteration_bounds = array<i64: 2, 1>, scalar_prefetch = 0 : i64, scratch_operands = 0 : i64, tpu.core_type = #tpu.core_type<tc>, window_params = [{transform_indices = @transform_0, window_bounds = array<i64: 2, 4, 128>}, {transform_indices = @transform_1, window_bounds = array<i64: 2, 3, 128>}, {transform_indices = @transform_2, window_bounds = array<i64: 1, 2, 3, 4>}, {transform_indices = @transform_3, window_bounds = array<i64: 1, 2, 3, 4>}, {transform_indices = @transform_4, window_bounds = array<i64: 1, 2, 4>}]} {
    %c0_i32 = arith.constant 0 : i32
    %0 = arith.cmpi eq, %arg1, %c0_i32 : i32
    %1 = arith.extui %0 : i1 to i32
    %c0_i32_0 = arith.constant 0 : i32
    %2 = arith.cmpi ne, %1, %c0_i32_0 : i32
    scf.if %2 {
      %cst_30 = arith.constant 0.000000e+00 : f32
      %21 = vector.broadcast %cst_30 : f32 to vector<1x2x3x4xf32>
      %c0_31 = arith.constant 0 : index
      %c0_32 = arith.constant 0 : index
      %c0_33 = arith.constant 0 : index
      %c0_34 = arith.constant 0 : index
      %22 = vector.load %arg4[%c0_31, %c0_32, %c0_33, %c0_34] : memref<1x2x3x4xf32, #tpu.memory_space<vmem>>, vector<1x2x3x4xf32>
      tpu.vector_store %arg4[%c0_31, %c0_32, %c0_33, %c0_34], %21 {strides = array<i32>} : memref<1x2x3x4xf32, #tpu.memory_space<vmem>>, vector<1x2x3x4xf32>,
      %cst_35 = arith.constant 0.000000e+00 : f32
      %23 = vector.broadcast %cst_35 : f32 to vector<1x2x3x4xf32>
      %c0_36 = arith.constant 0 : index
      %c0_37 = arith.constant 0 : index
      %c0_38 = arith.constant 0 : index
      %c0_39 = arith.constant 0 : index
      %24 = vector.load %arg5[%c0_36, %c0_37, %c0_38, %c0_39] : memref<1x2x3x4xf32, #tpu.memory_space<vmem>>, vector<1x2x3x4xf32>
      tpu.vector_store %arg5[%c0_36, %c0_37, %c0_38, %c0_39], %23 {strides = array<i32>} : memref<1x2x3x4xf32, #tpu.memory_space<vmem>>, vector<1x2x3x4xf32>,
      %cst_40 = arith.constant 0.000000e+00 : f32
      %25 = vector.broadcast %cst_40 : f32 to vector<1x2x4xf32>
      %c0_41 = arith.constant 0 : index
      %c0_42 = arith.constant 0 : index
      %c0_43 = arith.constant 0 : index
      %26 = vector.load %arg6[%c0_41, %c0_42, %c0_43] : memref<1x2x4xf32, #tpu.memory_space<vmem>>, vector<1x2x4xf32>
      tpu.vector_store %arg6[%c0_41, %c0_42, %c0_43], %25 {strides = array<i32>} : memref<1x2x4xf32, #tpu.memory_space<vmem>>, vector<1x2x4xf32>,
    } else {
    }
    %c0 = arith.constant 0 : index
    %c0_1 = arith.constant 0 : index
    %c0_2 = arith.constant 0 : index
    %3 = vector.load %arg2[%c0, %c0_1, %c0_2] : memref<2x4x128xf32, #tpu.memory_space<vmem>>, vector<2x4x128xf32>
    %c0_3 = arith.constant 0 : index
    %c0_4 = arith.constant 0 : index
    %c0_5 = arith.constant 0 : index
    %4 = vector.load %arg3[%c0_3, %c0_4, %c0_5] : memref<2x3x128xf32, #tpu.memory_space<vmem>>, vector<2x3x128xf32>
    %c0_6 = arith.constant 0 : index
    %c0_7 = arith.constant 0 : index
    %c0_8 = arith.constant 0 : index
    %c0_9 = arith.constant 0 : index
    %5 = vector.load %arg4[%c0_6, %c0_7, %c0_8, %c0_9] : memref<1x2x3x4xf32, #tpu.memory_space<vmem>>, vector<1x2x3x4xf32>
    "tpu.trace_start"() <{level = 10 : i32, message = "bth,bch->btc"}> : () -> ()
    %cst = arith.constant dense<0.000000e+00> : vector<2x3x4xf32>
    %6 = tpu.matmul %4, %3, %cst {dimension_numbers = #tpu.dot_dimension_numbers<[2], [2], [1], [1], [0, 0, 0, 1, 1, 1], [0], [0]>} : vector<2x3x128xf32>, vector<2x4x128xf32>, vector<2x3x4xf32> -> vector<2x3x4xf32>
    "tpu.trace_stop"() : () -> ()
    %7 = vector.shape_cast %6 : vector<2x3x4xf32> to vector<1x2x3x4xf32>
    %8 = arith.addf %5, %7 : vector<1x2x3x4xf32>
    %c0_10 = arith.constant 0 : index
    %c0_11 = arith.constant 0 : index
    %c0_12 = arith.constant 0 : index
    %c0_13 = arith.constant 0 : index
    %9 = vector.load %arg4[%c0_10, %c0_11, %c0_12, %c0_13] : memref<1x2x3x4xf32, #tpu.memory_space<vmem>>, vector<1x2x3x4xf32>
    tpu.vector_store %arg4[%c0_10, %c0_11, %c0_12, %c0_13], %8 {strides = array<i32>} : memref<1x2x3x4xf32, #tpu.memory_space<vmem>>, vector<1x2x3x4xf32>,
    %c0_14 = arith.constant 0 : index
    %c0_15 = arith.constant 0 : index
    %c0_16 = arith.constant 0 : index
    %c0_17 = arith.constant 0 : index
    %10 = vector.load %arg5[%c0_14, %c0_15, %c0_16, %c0_17] : memref<1x2x3x4xf32, #tpu.memory_space<vmem>>, vector<1x2x3x4xf32>
    %11 = arith.mulf %4, %4 : vector<2x3x128xf32>
    "tpu.trace_start"() <{level = 10 : i32, message = "bth,bch->btc"}> : () -> ()
    %cst_18 = arith.constant dense<0.000000e+00> : vector<2x3x4xf32>
    %12 = tpu.matmul %11, %3, %cst_18 {dimension_numbers = #tpu.dot_dimension_numbers<[2], [2], [1], [1], [0, 0, 0, 1, 1, 1], [0], [0]>} : vector<2x3x128xf32>, vector<2x4x128xf32>, vector<2x3x4xf32> -> vector<2x3x4xf32>
    "tpu.trace_stop"() : () -> ()
    %13 = vector.shape_cast %12 : vector<2x3x4xf32> to vector<1x2x3x4xf32>
    %14 = arith.addf %10, %13 : vector<1x2x3x4xf32>
    %c0_19 = arith.constant 0 : index
    %c0_20 = arith.constant 0 : index
    %c0_21 = arith.constant 0 : index
    %c0_22 = arith.constant 0 : index
    %15 = vector.load %arg5[%c0_19, %c0_20, %c0_21, %c0_22] : memref<1x2x3x4xf32, #tpu.memory_space<vmem>>, vector<1x2x3x4xf32>
    tpu.vector_store %arg5[%c0_19, %c0_20, %c0_21, %c0_22], %14 {strides = array<i32>} : memref<1x2x3x4xf32, #tpu.memory_space<vmem>>, vector<1x2x3x4xf32>,
    %c0_23 = arith.constant 0 : index
    %c0_24 = arith.constant 0 : index
    %c0_25 = arith.constant 0 : index
    %16 = vector.load %arg6[%c0_23, %c0_24, %c0_25] : memref<1x2x4xf32, #tpu.memory_space<vmem>>, vector<1x2x4xf32>
    %cst_26 = arith.constant dense<0.000000e+00> : vector<2x4xf32>
    %17 = vector.multi_reduction <add>, %3, %cst_26 [2] : vector<2x4x128xf32> to vector<2x4xf32>
    %18 = vector.shape_cast %17 : vector<2x4xf32> to vector<1x2x4xf32>
    %19 = arith.addf %16, %18 : vector<1x2x4xf32>
    %c0_27 = arith.constant 0 : index
    %c0_28 = arith.constant 0 : index
    %c0_29 = arith.constant 0 : index
    %20 = vector.load %arg6[%c0_27, %c0_28, %c0_29] : memref<1x2x4xf32, #tpu.memory_space<vmem>>, vector<1x2x4xf32>
    tpu.vector_store %arg6[%c0_27, %c0_28, %c0_29], %19 {strides = array<i32>} : memref<1x2x4xf32, #tpu.memory_space<vmem>>, vector<1x2x4xf32>,
    return
  }
  func.func @transform_0(%arg0: i32, %arg1: i32) -> (i32, i32, i32) {
    %c1_i32 = arith.constant 1 : i32
    %0 = arith.muli %arg0, %c1_i32 : i32
    %1 = arith.addi %0, %arg1 : i32
    %c0_i32 = arith.constant 0 : i32
    %c0_i32_0 = arith.constant 0 : i32
    %c0_i32_1 = arith.constant 0 : i32
    return %c0_i32, %c0_i32_0, %1 : i32, i32, i32
  }
  func.func @transform_1(%arg0: i32, %arg1: i32) -> (i32, i32, i32) {
    %c1_i32 = arith.constant 1 : i32
    %0 = arith.muli %arg0, %c1_i32 : i32
    %1 = arith.addi %0, %arg1 : i32
    %c0_i32 = arith.constant 0 : i32
    %c0_i32_0 = arith.constant 0 : i32
    %c0_i32_1 = arith.constant 0 : i32
    return %c0_i32, %c0_i32_0, %1 : i32, i32, i32
  }
  func.func @transform_2(%arg0: i32, %arg1: i32) -> (i32, i32, i32, i32) {
    %c0_i32 = arith.constant 0 : i32
    %c0_i32_0 = arith.constant 0 : i32
    %c0_i32_1 = arith.constant 0 : i32
    %c0_i32_2 = arith.constant 0 : i32
    return %arg0, %c0_i32, %c0_i32_0, %c0_i32_1 : i32, i32, i32, i32
  }
  func.func @transform_3(%arg0: i32, %arg1: i32) -> (i32, i32, i32, i32) {
    %c0_i32 = arith.constant 0 : i32
    %c0_i32_0 = arith.constant 0 : i32
    %c0_i32_1 = arith.constant 0 : i32
    %c0_i32_2 = arith.constant 0 : i32
    return %arg0, %c0_i32, %c0_i32_0, %c0_i32_1 : i32, i32, i32, i32
  }
  func.func @transform_4(%arg0: i32, %arg1: i32) -> (i32, i32, i32) {
    %c0_i32 = arith.constant 0 : i32
    %c0_i32_0 = arith.constant 0 : i32
    %c0_i32_1 = arith.constant 0 : i32
    return %arg0, %c0_i32, %c0_i32_0 : i32, i32, i32
  }
}

</mosaic_0001>

<llo_original>
// kernel: tpu_custom_call.1
$region0: #{tpu_custom_call.1}
  #allocation0 [shape = 'u32[]', space=smem, size = 0x4, offset = 0x4, fixed_abs, tag = 'smem constant byte address 0x4 - core index']
  #allocation1 [shape = 'u32[72,128]{1,0:T(1,128)}', space=vmem, size = 0x9000, scoped, tag = 'internal scratch']
  %s0 = inlined_call_operand.vmem [shape: f32[2,4,256], index: 0, kind: input, shape index: {}]
  %s1 = inlined_call_operand.vmem [shape: f32[2,3,256], index: 1, kind: input, shape index: {}]
  %s2 = inlined_call_operand.vmem [shape: f32[2,2,3,4], index: 2, kind: output, shape index: {0}]
  %s3 = inlined_call_operand.vmem [shape: f32[2,2,3,4], index: 3, kind: output, shape index: {1}]
  %s4 = inlined_call_operand.hbm [shape: f32[2,2,4], index: 4, kind: output, shape index: {2}]
  %5 = xla_tuple %s2, %s3, %s4
  %s6 = sld [smem:[#allocation0]]
  $region143: #{tpu_custom_call.1} parent=0
    _
  %s8 = ssub.s32 1, %s6
  %s9 = scalar_select 0, %s8, %s6
  $region1: #{tpu_custom_call.1} parent=0
    #allocation2 [shape = 'u8[8192]{0}', space=vmem, size = 0x2000, scoped, tag = 'input window, operand 0']
    #allocation3 [shape = 'u8[8192]{0}', space=vmem, size = 0x2000, scoped, tag = 'input window, operand 1']
    #allocation4 [shape = 'u8[2048]{0}', space=vmem, size = 0x800, scoped, tag = 'output window, operand 2']
    #allocation5 [shape = 's32[2]{0}', space=sflag, size = 0x8, scoped, tag = 'scoped memory for tpu_custom_call.1']
    %10 = vsyncpa [#allocation5], 0
    %s11 = scalar_lea.sflag [#allocation5], 1
    %12 = vsyncpa %s11, 0
    loop: start=0, step=1, limit=4
    $region2: #{tpu_custom_call.1} parent=1 // loop_pre_header
      _
    $region3: #{tpu_custom_call.1} parent=1 // loop_header
      %s14 = sphi 0, %s18
      %p15 = scmp.ge.s32.totalorder %s14, 4
      %s21 = sphi 0, %s33
      %s22 = sphi 0, %s29
      %s23 = sphi 0, %s21
      %s24 = sphi 0, %s22
      %s25 = sphi 0, %s23
      %s26 = sphi 0, %s24
      %s38 = sphi 0, %s40
      %s41 = sphi 0, %s38
      %s42 = sphi 0, %s41
      %s58 = sphi 0, %s42
      %s66 = sphi 0, %s68
      %s69 = sphi 0, %s66
      %s70 = sphi 0, %s69
      %s86 = sphi 0, %s70
      %s92 = sphi 0, %s94
      %s95 = sphi 0, %s92
      %s96 = sphi 0, %s95
      %s112 = sphi 0, %s96
      %s118 = sphi 0, %s120
      %s121 = sphi 0, %s118
      %s122 = sphi 0, %s121
      %s138 = sphi 0, %s122
      %s144 = sphi 0, %s146
      %s147 = sphi 0, %s144
      %s148 = sphi 0, %s147
      %s164 = sphi 0, %s148
    $region4: #{tpu_custom_call.1} parent=1 // loop_header_branch
      %17 = sbr.rel (%p15) target = $region8
    $region5: #{tpu_custom_call.1} parent=1 // loop_body
      %s19 = ssub.s32 %s14, 1
      %s20 = ssub.s32 %s14, 2
      %s27 = sadd.s32 1, %s22
      %p28 = scmp.ge.s32.totalorder %s27, 1
      %s29 = scalar_select %p28, 0, %s27
      %s30 = sadd.s32 1, %s21
      %s31 = scalar_select %p28, %s30, %s21
      %p32 = scmp.ge.s32.totalorder %s31, 2
      %s33 = scalar_select %p32, 0, %s31
      %s34 = sadd.s32 %s21, %s22
      %s35 = sadd.s32 %s33, %s29
      %s36 = ssub.s32 %s34, %s35
      %p37 = scmp.eq.s32.totalorder %s36, 0
      %s39 = sadd.s32 %s38, 1
      %s40 = scalar_select %p37, %s38, %s39
      %p43 = pneg %p37
      %p44 = scmp.eq.s32.totalorder %s14, 1
      %p45 = por %p43, %p44
      %p46 = scmp.ne.s32.totalorder %s38, %s41
      %p47 = scmp.eq.s32.totalorder %s14, 0
      %p48 = por %p46, %p47
      %p49 = scmp.ne.s32.totalorder %s38, %s41
      %p50 = scmp.eq.s32.totalorder %s19, 1
      %p51 = por %p49, %p50
      %p52 = scmp.ne.s32.totalorder %s41, %s42
      %p53 = scmp.eq.s32.totalorder %s19, 0
      %p54 = por %p52, %p53
      %p55 = scmp.ne.s32.totalorder %s41, %s42
      %p56 = scmp.eq.s32.totalorder %s20, 1
      %p57 = por %p55, %p56
      %p59 = scmp.ne.s32.totalorder %s42, %s58
      %p60 = scmp.eq.s32.totalorder %s20, 0
      %p61 = por %p59, %p60
      %s62 = sadd.s32 %s21, %s22
      %s63 = sadd.s32 %s33, %s29
      %s64 = ssub.s32 %s62, %s63
      %p65 = scmp.eq.s32.totalorder %s64, 0
      %s67 = sadd.s32 %s66, 1
      %s68 = scalar_select %p65, %s66, %s67
      %p71 = pneg %p65
      %p72 = scmp.eq.s32.totalorder %s14, 1
      %p73 = por %p71, %p72
      %p74 = scmp.ne.s32.totalorder %s66, %s69
      %p75 = scmp.eq.s32.totalorder %s14, 0
      %p76 = por %p74, %p75
      %p77 = scmp.ne.s32.totalorder %s66, %s69
      %p78 = scmp.eq.s32.totalorder %s19, 1
      %p79 = por %p77, %p78
      %p80 = scmp.ne.s32.totalorder %s69, %s70
      %p81 = scmp.eq.s32.totalorder %s19, 0
      %p82 = por %p80, %p81
      %p83 = scmp.ne.s32.totalorder %s69, %s70
      %p84 = scmp.eq.s32.totalorder %s20, 1
      %p85 = por %p83, %p84
      %p87 = scmp.ne.s32.totalorder %s70, %s86
      %p88 = scmp.eq.s32.totalorder %s20, 0
      %p89 = por %p87, %p88
      %s90 = ssub.s32 %s21, %s33
      %p91 = scmp.eq.s32.totalorder %s90, 0
      %s93 = sadd.s32 %s92, 1
      %s94 = scalar_select %p91, %s92, %s93
      %p97 = pneg %p91
      %p98 = scmp.eq.s32.totalorder %s14, 1
      %p99 = por %p97, %p98
      %p100 = scmp.ne.s32.totalorder %s92, %s95
      %p101 = scmp.eq.s32.totalorder %s14, 0
      %p102 = por %p100, %p101
      %p103 = scmp.ne.s32.totalorder %s92, %s95
      %p104 = scmp.eq.s32.totalorder %s19, 1
      %p105 = por %p103, %p104
      %p106 = scmp.ne.s32.totalorder %s95, %s96
      %p107 = scmp.eq.s32.totalorder %s19, 0
      %p108 = por %p106, %p107
      %p109 = scmp.ne.s32.totalorder %s95, %s96
      %p110 = scmp.eq.s32.totalorder %s20, 1
      %p111 = por %p109, %p110
      %p113 = scmp.ne.s32.totalorder %s96, %s112
      %p114 = scmp.eq.s32.totalorder %s20, 0
      %p115 = por %p113, %p114
      %s116 = ssub.s32 %s21, %s33
      %p117 = scmp.eq.s32.totalorder %s116, 0
      %s119 = sadd.s32 %s118, 1
      %s120 = scalar_select %p117, %s118, %s119
      %p123 = pneg %p117
      %p124 = scmp.eq.s32.totalorder %s14, 1
      %p125 = por %p123, %p124
      %p126 = scmp.ne.s32.totalorder %s118, %s121
      %p127 = scmp.eq.s32.totalorder %s14, 0
      %p128 = por %p126, %p127
      %p129 = scmp.ne.s32.totalorder %s118, %s121
      %p130 = scmp.eq.s32.totalorder %s19, 1
      %p131 = por %p129, %p130
      %p132 = scmp.ne.s32.totalorder %s121, %s122
      %p133 = scmp.eq.s32.totalorder %s19, 0
      %p134 = por %p132, %p133
      %p135 = scmp.ne.s32.totalorder %s121, %s122
      %p136 = scmp.eq.s32.totalorder %s20, 1
      %p137 = por %p135, %p136
      %p139 = scmp.ne.s32.totalorder %s122, %s138
      %p140 = scmp.eq.s32.totalorder %s20, 0
      %p141 = por %p139, %p140
      %s142 = ssub.s32 %s21, %s33
      %p143 = scmp.eq.s32.totalorder %s142, 0
      %s145 = sadd.s32 %s144, 1
      %s146 = scalar_select %p143, %s144, %s145
      %p149 = pneg %p143
      %p150 = scmp.eq.s32.totalorder %s14, 1
      %p151 = por %p149, %p150
      %p152 = scmp.ne.s32.totalorder %s144, %s147
      %p153 = scmp.eq.s32.totalorder %s14, 0
      %p154 = por %p152, %p153
      %p155 = scmp.ne.s32.totalorder %s144, %s147
      %p156 = scmp.eq.s32.totalorder %s19, 1
      %p157 = por %p155, %p156
      %p158 = scmp.ne.s32.totalorder %s147, %s148
      %p159 = scmp.eq.s32.totalorder %s19, 0
      %p160 = por %p158, %p159
      %p161 = scmp.ne.s32.totalorder %s147, %s148
      %p162 = scmp.eq.s32.totalorder %s20, 1
      %p163 = por %p161, %p162
      %p165 = scmp.ne.s32.totalorder %s148, %s164
      %p166 = scmp.eq.s32.totalorder %s20, 0
      %p167 = por %p165, %p166
      %p168 = scmp.le.s32.totalorder 1, %s14
      %p169 = scmp.lt.s32.totalorder %s14, 3
      %p170 = pnand %p168, %p169
      %p171 = pneg %p170
      // Predicated region
      $region9: #{tpu_custom_call.1} parent=5 // pred_check
        _
      $region10: #{tpu_custom_call.1} parent=5 // pred_check_branch
        %173 = sbr.rel (%p170) target = $region12
      $region11: #{tpu_custom_call.1} parent=5 // pred_region
        %s174 = ssub.s32 %s14, 1
      $region12: #{tpu_custom_call.1} parent=5 // pred_fallthru
        _
      %p175 = scmp.lt.s32.totalorder %s14, 2
      // Predicated region
      $region13: #{tpu_custom_call.1} parent=5 // pred_check
        %p176 = pneg %p175
      $region14: #{tpu_custom_call.1} parent=5 // pred_check_branch
        %178 = sbr.rel (%p176) target = $region16
      $region15: #{tpu_custom_call.1} parent=5 // pred_region
        // Predicated region
        $region17: #{tpu_custom_call.1} parent=15 // pred_check
          %p179 = pneg %p48
        $region18: #{tpu_custom_call.1} parent=15 // pred_check_branch
          %181 = sbr.rel (%p179) target = $region20
        $region19: #{tpu_custom_call.1} parent=15 // pred_region
          %s182 = sand.u32 %s38, 1
          %s183 = sand.u32 %s38, 1
          %s184 = smul.addr %s183, 8
          %s185 = scalar_lea.vmem [#allocation2], %s184
          %s186 = sadd.s32 %s21, %s22
          %s187 = smul.addr %s186, 4
          %s188 = scalar_lea.vmem %s0, %s187
          // Predicated region
          $region21: #{tpu_custom_call.1} parent=19 // pred_check
            _
          $region22: #{tpu_custom_call.1} parent=19 // pred_check_branch
            %190 = sbr.rel (0) target = $region24
          $region23: #{tpu_custom_call.1} parent=19 // pred_region
            // Predicated region
            $region25: #{tpu_custom_call.1} parent=23 // pred_check
              _
            $region26: #{tpu_custom_call.1} parent=23 // pred_check_branch
              %192 = sbr.rel target = $region28
            $region27: #{tpu_custom_call.1} parent=23 // pred_region
              // Predicated region
              $region40: #{tpu_custom_call.1} parent=27 // pred_check
                _
              $region41: #{tpu_custom_call.1} parent=27 // pred_check_branch
                %210 = sbr.rel (0) target = $region43
              $region42: #{tpu_custom_call.1} parent=27 // pred_region
                loop: start=0, step=1, limit=1
                $region44: #{tpu_custom_call.1} parent=42 // loop_pre_header
                  _
                $region45: #{tpu_custom_call.1} parent=42 // loop_header
                  %s212 = sphi 0, %s216
                  %p213 = scmp.ge.s32.totalorder %s212, 1
                  %s217 = sphi %s188, %s188
                  %s218 = sphi %s185, %s185
                $region46: #{tpu_custom_call.1} parent=42 // loop_header_branch
                  %215 = sbr.rel (%p213) target = $region50
                $region47: #{tpu_custom_call.1} parent=42 // loop_body
                  _
                $region48: #{tpu_custom_call.1} parent=42 // loop_footer
                  %s216 = sadd.s32 1, %s212
                $region49: #{tpu_custom_call.1} parent=42 // loop_footer_branch
                  %211 = sbr.rel target = $region45
                $region50: #{tpu_custom_call.1} parent=42 // loop_exit
                  _
                %s220 = ssub.s32 16, 1
                loop: start=0, step=1, limit=1
                $region51: #{tpu_custom_call.1} parent=42 // loop_pre_header
                  _
                $region52: #{tpu_custom_call.1} parent=42 // loop_header
                  %s222 = sphi 0, %s226
                  %p223 = scmp.ge.s32.totalorder %s222, 1
                  %s227 = sphi %s188, %s188
                  %s228 = sphi %s185, %s185
                $region53: #{tpu_custom_call.1} parent=42 // loop_header_branch
                  %225 = sbr.rel (%p223) target = $region57
                $region54: #{tpu_custom_call.1} parent=42 // loop_body
                  %v229 = vld [vmem:[%s227] sm:%s220]
                  %230 = vst [vmem:[%s228] sm:%s220] %v229
                  %v231 = vld [vmem:[%s227 + $0x8] sm:%s220]
                  %232 = vst [vmem:[%s228 + $0x4] sm:%s220] %v231
                $region55: #{tpu_custom_call.1} parent=42 // loop_footer
                  %s226 = sadd.s32 1, %s222
                $region56: #{tpu_custom_call.1} parent=42 // loop_footer_branch
                  %221 = sbr.rel target = $region52
                $region57: #{tpu_custom_call.1} parent=42 // loop_exit
                  _
              $region43: #{tpu_custom_call.1} parent=27 // pred_fallthru
                _
            $region28: #{tpu_custom_call.1} parent=23 // pred_fallthru
              _
            // Predicated region
            $region29: #{tpu_custom_call.1} parent=23 // pred_check
              _
            $region30: #{tpu_custom_call.1} parent=23 // pred_check_branch
              %194 = sbr.rel (0) target = $region32
            $region31: #{tpu_custom_call.1} parent=23 // pred_region
              %s196 = ssub.s32 16, 1
              loop: start=0, step=1, limit=1
              $region33: #{tpu_custom_call.1} parent=31 // loop_pre_header
                _
              $region34: #{tpu_custom_call.1} parent=31 // loop_header
                %s198 = sphi 0, %s202
                %p199 = scmp.ge.s32.totalorder %s198, 1
                %s203 = sphi %s188, %s188
                %s204 = sphi %s185, %s185
              $region35: #{tpu_custom_call.1} parent=31 // loop_header_branch
                %201 = sbr.rel (%p199) target = $region39
              $region36: #{tpu_custom_call.1} parent=31 // loop_body
                %v205 = vld [vmem:[%s203] sm:%s196]
                %206 = vst [vmem:[%s204] sm:%s196] %v205
                %v207 = vld [vmem:[%s203 + $0x8] sm:%s196]
                %208 = vst [vmem:[%s204 + $0x4] sm:%s196] %v207
              $region37: #{tpu_custom_call.1} parent=31 // loop_footer
                %s202 = sadd.s32 1, %s198
              $region38: #{tpu_custom_call.1} parent=31 // loop_footer_branch
                %197 = sbr.rel target = $region34
              $region39: #{tpu_custom_call.1} parent=31 // loop_exit
                _
            $region32: #{tpu_custom_call.1} parent=23 // pred_fallthru
              _
          $region24: #{tpu_custom_call.1} parent=19 // pred_fallthru
            _
          %233 = vnop
        $region20: #{tpu_custom_call.1} parent=15 // pred_fallthru
          _
        // Predicated region
        $region58: #{tpu_custom_call.1} parent=15 // pred_check
          %p234 = pneg %p76
        $region59: #{tpu_custom_call.1} parent=15 // pred_check_branch
          %236 = sbr.rel (%p234) target = $region61
        $region60: #{tpu_custom_call.1} parent=15 // pred_region
          %s237 = sand.u32 %s66, 1
          %s238 = sand.u32 %s66, 1
          %s239 = smul.addr %s238, 8
          %s240 = scalar_lea.vmem [#allocation3], %s239
          %s241 = sadd.s32 %s21, %s22
          %s242 = smul.addr %s241, 4
          %s243 = scalar_lea.vmem %s1, %s242
          // Predicated region
          $region62: #{tpu_custom_call.1} parent=60 // pred_check
            _
          $region63: #{tpu_custom_call.1} parent=60 // pred_check_branch
            %245 = sbr.rel (0) target = $region65
          $region64: #{tpu_custom_call.1} parent=60 // pred_region
            // Predicated region
            $region66: #{tpu_custom_call.1} parent=64 // pred_check
              _
            $region67: #{tpu_custom_call.1} parent=64 // pred_check_branch
              %247 = sbr.rel target = $region69
            $region68: #{tpu_custom_call.1} parent=64 // pred_region
              // Predicated region
              $region81: #{tpu_custom_call.1} parent=68 // pred_check
                _
              $region82: #{tpu_custom_call.1} parent=68 // pred_check_branch
                %265 = sbr.rel (0) target = $region84
              $region83: #{tpu_custom_call.1} parent=68 // pred_region
                loop: start=0, step=1, limit=1
                $region85: #{tpu_custom_call.1} parent=83 // loop_pre_header
                  _
                $region86: #{tpu_custom_call.1} parent=83 // loop_header
                  %s267 = sphi 0, %s271
                  %p268 = scmp.ge.s32.totalorder %s267, 1
                  %s272 = sphi %s243, %s243
                  %s273 = sphi %s240, %s240
                $region87: #{tpu_custom_call.1} parent=83 // loop_header_branch
                  %270 = sbr.rel (%p268) target = $region91
                $region88: #{tpu_custom_call.1} parent=83 // loop_body
                  _
                $region89: #{tpu_custom_call.1} parent=83 // loop_footer
                  %s271 = sadd.s32 1, %s267
                $region90: #{tpu_custom_call.1} parent=83 // loop_footer_branch
                  %266 = sbr.rel target = $region86
                $region91: #{tpu_custom_call.1} parent=83 // loop_exit
                  _
                %s275 = ssub.s32 16, 1
                loop: start=0, step=1, limit=1
                $region92: #{tpu_custom_call.1} parent=83 // loop_pre_header
                  _
                $region93: #{tpu_custom_call.1} parent=83 // loop_header
                  %s277 = sphi 0, %s281
                  %p278 = scmp.ge.s32.totalorder %s277, 1
                  %s282 = sphi %s243, %s243
                  %s283 = sphi %s240, %s240
                $region94: #{tpu_custom_call.1} parent=83 // loop_header_branch
                  %280 = sbr.rel (%p278) target = $region98
                $region95: #{tpu_custom_call.1} parent=83 // loop_body
                  %v284 = vld [vmem:[%s282] sm:%s275]
                  %285 = vst [vmem:[%s283] sm:%s275] %v284
                  %v286 = vld [vmem:[%s282 + $0x8] sm:%s275]
                  %287 = vst [vmem:[%s283 + $0x4] sm:%s275] %v286
                $region96: #{tpu_custom_call.1} parent=83 // loop_footer
                  %s281 = sadd.s32 1, %s277
                $region97: #{tpu_custom_call.1} parent=83 // loop_footer_branch
                  %276 = sbr.rel target = $region93
                $region98: #{tpu_custom_call.1} parent=83 // loop_exit
                  _
              $region84: #{tpu_custom_call.1} parent=68 // pred_fallthru
                _
            $region69: #{tpu_custom_call.1} parent=64 // pred_fallthru
              _
            // Predicated region
            $region70: #{tpu_custom_call.1} parent=64 // pred_check
              _
            $region71: #{tpu_custom_call.1} parent=64 // pred_check_branch
              %249 = sbr.rel (0) target = $region73
            $region72: #{tpu_custom_call.1} parent=64 // pred_region
              %s251 = ssub.s32 16, 1
              loop: start=0, step=1, limit=1
              $region74: #{tpu_custom_call.1} parent=72 // loop_pre_header
                _
              $region75: #{tpu_custom_call.1} parent=72 // loop_header
                %s253 = sphi 0, %s257
                %p254 = scmp.ge.s32.totalorder %s253, 1
                %s258 = sphi %s243, %s243
                %s259 = sphi %s240, %s240
              $region76: #{tpu_custom_call.1} parent=72 // loop_header_branch
                %256 = sbr.rel (%p254) target = $region80
              $region77: #{tpu_custom_call.1} parent=72 // loop_body
                %v260 = vld [vmem:[%s258] sm:%s251]
                %261 = vst [vmem:[%s259] sm:%s251] %v260
                %v262 = vld [vmem:[%s258 + $0x8] sm:%s251]
                %263 = vst [vmem:[%s259 + $0x4] sm:%s251] %v262
              $region78: #{tpu_custom_call.1} parent=72 // loop_footer
                %s257 = sadd.s32 1, %s253
              $region79: #{tpu_custom_call.1} parent=72 // loop_footer_branch
                %252 = sbr.rel target = $region75
              $region80: #{tpu_custom_call.1} parent=72 // loop_exit
                _
            $region73: #{tpu_custom_call.1} parent=64 // pred_fallthru
              _
          $region65: #{tpu_custom_call.1} parent=60 // pred_fallthru
            _
          %288 = vnop
        $region61: #{tpu_custom_call.1} parent=15 // pred_fallthru
          _
      $region16: #{tpu_custom_call.1} parent=5 // pred_fallthru
        _
      %p289 = scmp.le.s32.totalorder 1, %s14
      %p290 = scmp.lt.s32.totalorder %s14, 3
      %p291 = pnand %p289, %p290
      %p292 = pneg %p291
      // Predicated region
      $region99: #{tpu_custom_call.1} parent=5 // pred_check
        _
      $region100: #{tpu_custom_call.1} parent=5 // pred_check_branch
        %294 = sbr.rel (%p291) target = $region102
      $region101: #{tpu_custom_call.1} parent=5 // pred_region
        %s295 = ssub.s32 %s14, 1
        %s296 = sand.u32 %s41, 1
        %s297 = sand.u32 %s41, 1
        %s298 = smul.addr %s297, 8
        %s299 = scalar_lea.vmem [#allocation2], %s298
        // Predicated region
        $region103: #{tpu_custom_call.1} parent=101 // pred_check
          %p300 = pneg %p54
        $region104: #{tpu_custom_call.1} parent=101 // pred_check_branch
          %302 = sbr.rel (%p300) target = $region106
        $region105: #{tpu_custom_call.1} parent=101 // pred_region
          _
        $region106: #{tpu_custom_call.1} parent=101 // pred_fallthru
          _
        %s303 = sand.u32 %s69, 1
        %s304 = sand.u32 %s69, 1
        %s305 = smul.addr %s304, 8
        %s306 = scalar_lea.vmem [#allocation3], %s305
        // Predicated region
        $region107: #{tpu_custom_call.1} parent=101 // pred_check
          %p307 = pneg %p82
        $region108: #{tpu_custom_call.1} parent=101 // pred_check_branch
          %309 = sbr.rel (%p307) target = $region110
        $region109: #{tpu_custom_call.1} parent=101 // pred_region
          _
        $region110: #{tpu_custom_call.1} parent=101 // pred_fallthru
          _
        %s310 = sand.u32 %s41, 1
        %s311 = sand.u32 %s41, 1
        %s312 = smul.addr %s311, 8
        %s313 = scalar_lea.vmem [#allocation2], %s312
        %p314 = pneg %p54
        %p315 = pneg %p51
        %s316 = sand.u32 %s69, 1
        %s317 = sand.u32 %s69, 1
        %s318 = smul.addr %s317, 8
        %s319 = scalar_lea.vmem [#allocation3], %s318
        %p320 = pneg %p82
        %p321 = pneg %p79
        %p322 = pneg %p108
        %p323 = pneg %p105
        %p324 = scmp.lt.s32.totalorder %s23, 1
        %s325 = scalar_select %p324, %s23, 1
        %s326 = smul.addr %s325, 2
        %s327 = smul.addr %s326, 4
        %s328 = scalar_lea.vmem %s2, %s327
        %p329 = pneg %p134
        %p330 = pneg %p131
        %p331 = scmp.lt.s32.totalorder %s23, 1
        %s332 = scalar_select %p331, %s23, 1
        %s333 = smul.addr %s332, 2
        %s334 = smul.addr %s333, 4
        %s335 = scalar_lea.vmem %s3, %s334
        %p336 = pneg %p160
        %p337 = pneg %p157
        %s338 = sand.u32 %s147, 1
        %s339 = scalar_lea.sflag [#allocation5], %s338
        %s340 = sand.u32 %s147, 1
        %s341 = smul.addr %s340, 2
        %s342 = scalar_lea.vmem [#allocation4], %s341
        %s343 = sadd.s32 %s23, %s24
        %s344 = sadd.s32 %s23, %s24
        %p345 = scmp.lt.s32.totalorder %s23, 1
        %s346 = scalar_select %p345, %s23, 1
        %s347 = smul.addr %s346, 2
        %s348 = smul.addr %s347, 4
        %s349 = scalar_lea.vmem %s2, %s348
        %p350 = scmp.lt.s32.totalorder %s23, 1
        %s351 = scalar_select %p350, %s23, 1
        %s352 = smul.addr %s351, 2
        %s353 = smul.addr %s352, 4
        %s354 = scalar_lea.vmem %s3, %s353
        %p355 = scmp.eq.s32.totalorder %s24, 0
        // Predicated region
        $region111: #{tpu_custom_call.1} parent=101 // pred_check
          %p356 = pneg %p355
        $region112: #{tpu_custom_call.1} parent=101 // pred_check_branch
          %358 = sbr.rel (%p356) target = $region114
        $region113: #{tpu_custom_call.1} parent=101 // pred_region
          %vm359 = vcmask 26624
          %360 = vst.msk [vmem:[%s349] sm:$0x7] %vm359, 0.0
          %361 = vst.msk [vmem:[%s349 + $0x4] sm:$0x7] %vm359, 0.0
          %362 = vst.msk [vmem:[%s354] sm:$0x7] %vm359, 0.0
          %363 = vst.msk [vmem:[%s354 + $0x4] sm:$0x7] %vm359, 0.0
          %vm364 = vcmask 25600
          %365 = vst.msk [vmem:[%s342] sm:$0x3] %vm364, 0.0
        $region114: #{tpu_custom_call.1} parent=101 // pred_fallthru
          _
        %v366 = vld [vmem:[%s299] sm:$0xf]
        %v367 = vld [vmem:[%s299 + $0x4] sm:$0xf]
        %v368 = vld [vmem:[%s306] sm:$0x7]
        %v369 = vld [vmem:[%s306 + $0x4] sm:$0x7]
        %v370 = vld [vmem:[%s349] sm:$0x7]
        %v371 = vld [vmem:[%s349 + $0x4] sm:$0x7]
        %372 = vmatpush.xpose.msra.mxu0 0.0
        %373 = vmatpush.xpose.msra.mxu0 0.0
        %374 = vmatpush.xpose.msra.mxu0 0.0
        %375 = vmatpush.xpose.msra.mxu0 0.0
        %376 = vmatpush.xpose.msra.mxu0 0.0
        %377 = vmatpush.xpose.msra.mxu0 0.0
        %378 = vmatpush.xpose.msra.mxu0 0.0
        %379 = vmatpush.xpose.msra.mxu0 0.0
        %380 = vmatpush.xpose.msra.mxu0 0.0
        %381 = vmatpush.xpose.msra.mxu0 0.0
        %382 = vmatpush.xpose.msra.mxu0 0.0
        %383 = vmatpush.xpose.msra.mxu0 0.0
        %384 = vmatpush.xpose.msra.mxu0 0.0
        %385 = vmatpush.xpose.msra.mxu0 0.0
        %386 = vmatpush.xpose.msra.mxu0 0.0
        %387 = vmatpush.xpose.msra.mxu0 %v366
        %388 = vmatmul.f32.gmra.mxu0 %v368
        %v389 = vpop.f32.mrf.mxu0
        %v390 = vadd.f32 0.0, %v389
        %391 = vdwg.mxu0
        %392 = vmatpush.xpose.msra.mxu0 0.0
        %393 = vmatpush.xpose.msra.mxu0 0.0
        %394 = vmatpush.xpose.msra.mxu0 0.0
        %395 = vmatpush.xpose.msra.mxu0 0.0
        %396 = vmatpush.xpose.msra.mxu0 0.0
        %397 = vmatpush.xpose.msra.mxu0 0.0
        %398 = vmatpush.xpose.msra.mxu0 0.0
        %399 = vmatpush.xpose.msra.mxu0 0.0
        %400 = vmatpush.xpose.msra.mxu0 0.0
        %401 = vmatpush.xpose.msra.mxu0 0.0
        %402 = vmatpush.xpose.msra.mxu0 0.0
        %403 = vmatpush.xpose.msra.mxu0 0.0
        %404 = vmatpush.xpose.msra.mxu0 0.0
        %405 = vmatpush.xpose.msra.mxu0 0.0
        %406 = vmatpush.xpose.msra.mxu0 0.0
        %407 = vmatpush.xpose.msra.mxu0 %v367
        %408 = vmatmul.f32.gmra.mxu0 %v369
        %v409 = vpop.f32.mrf.mxu0
        %v410 = vadd.f32 0.0, %v409
        %411 = vdwg.mxu0
        %v412 = vadd.f32 %v370, %v390
        %v413 = vadd.f32 %v371, %v410
        %vm414 = vcmask 26624
        %415 = vst.msk [vmem:[%s349] sm:$0x7] %vm414, %v412
        %416 = vst.msk [vmem:[%s349 + $0x4] sm:$0x7] %vm414, %v413
        %v417 = vld [vmem:[%s354] sm:$0x7]
        %v418 = vld [vmem:[%s354 + $0x4] sm:$0x7]
        %v419 = vmul.f32 %v368, %v368
        %v420 = vmul.f32 %v369, %v369
        %421 = vmatpush.xpose.msra.mxu0 0.0
        %422 = vmatpush.xpose.msra.mxu0 0.0
        %423 = vmatpush.xpose.msra.mxu0 0.0
        %424 = vmatpush.xpose.msra.mxu0 0.0
        %425 = vmatpush.xpose.msra.mxu0 0.0
        %426 = vmatpush.xpose.msra.mxu0 0.0
        %427 = vmatpush.xpose.msra.mxu0 0.0
        %428 = vmatpush.xpose.msra.mxu0 0.0
        %429 = vmatpush.xpose.msra.mxu0 0.0
        %430 = vmatpush.xpose.msra.mxu0 0.0
        %431 = vmatpush.xpose.msra.mxu0 0.0
        %432 = vmatpush.xpose.msra.mxu0 0.0
        %433 = vmatpush.xpose.msra.mxu0 0.0
        %434 = vmatpush.xpose.msra.mxu0 0.0
        %435 = vmatpush.xpose.msra.mxu0 0.0
        %436 = vmatpush.xpose.msra.mxu0 %v366
        %437 = vmatmul.f32.gmra.mxu0 %v419
        %v438 = vpop.f32.mrf.mxu0
        %v439 = vadd.f32 0.0, %v438
        %440 = vdwg.mxu0
        %441 = vmatpush.xpose.msra.mxu0 0.0
        %442 = vmatpush.xpose.msra.mxu0 0.0
        %443 = vmatpush.xpose.msra.mxu0 0.0
        %444 = vmatpush.xpose.msra.mxu0 0.0
        %445 = vmatpush.xpose.msra.mxu0 0.0
        %446 = vmatpush.xpose.msra.mxu0 0.0
        %447 = vmatpush.xpose.msra.mxu0 0.0
        %448 = vmatpush.xpose.msra.mxu0 0.0
        %449 = vmatpush.xpose.msra.mxu0 0.0
        %450 = vmatpush.xpose.msra.mxu0 0.0
        %451 = vmatpush.xpose.msra.mxu0 0.0
        %452 = vmatpush.xpose.msra.mxu0 0.0
        %453 = vmatpush.xpose.msra.mxu0 0.0
        %454 = vmatpush.xpose.msra.mxu0 0.0
        %455 = vmatpush.xpose.msra.mxu0 0.0
        %456 = vmatpush.xpose.msra.mxu0 %v367
        %457 = vmatmul.f32.gmra.mxu0 %v420
        %v458 = vpop.f32.mrf.mxu0
        %v459 = vadd.f32 0.0, %v458
        %460 = vdwg.mxu0
        %v461 = vadd.f32 %v417, %v439
        %v462 = vadd.f32 %v418, %v459
        %463 = vst.msk [vmem:[%s354] sm:$0x7] %vm414, %v461
        %464 = vst.msk [vmem:[%s354 + $0x4] sm:$0x7] %vm414, %v462
        %v465 = vld [vmem:[%s342] sm:$0x3]
        %vm466 = vcmask 1043456
        %v467 = vsel %vm466, %v366, 0.0
        %468 = vadd.xlane.f32.xlu0 %v467
        %v469 = vpop.xlane.xlu0 %468
        %v470 = vsel %vm466, %v367, 0.0
        %471 = vadd.xlane.f32.xlu0 %v470
        %v472 = vpop.xlane.xlu0 %471
        %v475 = vlaneseq
        %v476 = vand.u32 %v475, 127
        %v477 = vperm.slane %v469, %v476
        %v478 = vperm.slane %v472, %v476
        %vm479 = vcmask 1041409
        %v480 = vsel %vm479, %v478, %v477
        %v482 = vadd.f32 %v465, %v480
        %vm483 = vcmask 25600
        %484 = vst.msk [vmem:[%s342] sm:$0x3] %vm483, %v482
        %p485 = scmp.lt.s32.totalorder %s23, 1
        %s486 = scalar_select %p485, %s23, 1
        %s487 = smul.addr %s486, 2
        %s488 = smul.addr %s487, 4
        %s489 = scalar_lea.vmem %s2, %s488
        %p490 = scmp.lt.s32.totalorder %s23, 1
        %s491 = scalar_select %p490, %s23, 1
        %s492 = smul.addr %s491, 2
        %s493 = smul.addr %s492, 4
        %s494 = scalar_lea.vmem %s3, %s493
        %s495 = sand.u32 %s147, 1
        %s496 = scalar_lea.sflag [#allocation5], %s495
        %s497 = sand.u32 %s147, 1
        %s498 = smul.addr %s497, 2
        %s499 = scalar_lea.vmem [#allocation4], %s498
        // Predicated region
        $region115: #{tpu_custom_call.1} parent=101 // pred_check
          %p500 = pneg %p105
        $region116: #{tpu_custom_call.1} parent=101 // pred_check_branch
          %502 = sbr.rel (%p500) target = $region118
        $region117: #{tpu_custom_call.1} parent=101 // pred_region
          _
        $region118: #{tpu_custom_call.1} parent=101 // pred_fallthru
          _
        // Predicated region
        $region119: #{tpu_custom_call.1} parent=101 // pred_check
          %p503 = pneg %p131
        $region120: #{tpu_custom_call.1} parent=101 // pred_check_branch
          %505 = sbr.rel (%p503) target = $region122
        $region121: #{tpu_custom_call.1} parent=101 // pred_region
          _
        $region122: #{tpu_custom_call.1} parent=101 // pred_fallthru
          _
        // Predicated region
        $region123: #{tpu_custom_call.1} parent=101 // pred_check
          %p506 = pneg %p157
        $region124: #{tpu_custom_call.1} parent=101 // pred_check_branch
          %508 = sbr.rel (%p506) target = $region126
        $region125: #{tpu_custom_call.1} parent=101 // pred_region
          %510 = vsyncadd %s496, 0
          %s511 = smul.addr %s23, 2
          %s512 = scalar_lea.hbm %s4, %s511
          %s514 = sshll.u32 %s499, 4
          %s515 = int_to_ptr.vmem [resolvable:$true] %s514
          %s516 = sshll.u32 %s512, 4
          %s517 = int_to_ptr.hbm [resolvable:$true] %s516
          %519 = dma.vmem_to_hbm [thread:$0]  %s515, 32, %s517, %s496
        $region126: #{tpu_custom_call.1} parent=101 // pred_fallthru
          _
      $region102: #{tpu_custom_call.1} parent=5 // pred_fallthru
        _
      %p520 = scmp.le.s32.totalorder 2, %s14
      // Predicated region
      $region127: #{tpu_custom_call.1} parent=5 // pred_check
        %p521 = pneg %p520
      $region128: #{tpu_custom_call.1} parent=5 // pred_check_branch
        %523 = sbr.rel (%p521) target = $region130
      $region129: #{tpu_custom_call.1} parent=5 // pred_region
        %s524 = ssub.s32 %s14, 2
        // Predicated region
        $region131: #{tpu_custom_call.1} parent=129 // pred_check
          %p525 = pneg %p111
        $region132: #{tpu_custom_call.1} parent=129 // pred_check_branch
          %527 = sbr.rel (%p525) target = $region134
        $region133: #{tpu_custom_call.1} parent=129 // pred_region
          %p528 = scmp.lt.s32.totalorder %s25, 1
          %s529 = scalar_select %p528, %s25, 1
          %s530 = smul.addr %s529, 2
          %s531 = smul.addr %s530, 4
          %s532 = scalar_lea.vmem %s2, %s531
        $region134: #{tpu_custom_call.1} parent=129 // pred_fallthru
          _
        // Predicated region
        $region135: #{tpu_custom_call.1} parent=129 // pred_check
          %p533 = pneg %p137
        $region136: #{tpu_custom_call.1} parent=129 // pred_check_branch
          %535 = sbr.rel (%p533) target = $region138
        $region137: #{tpu_custom_call.1} parent=129 // pred_region
          %p536 = scmp.lt.s32.totalorder %s25, 1
          %s537 = scalar_select %p536, %s25, 1
          %s538 = smul.addr %s537, 2
          %s539 = smul.addr %s538, 4
          %s540 = scalar_lea.vmem %s3, %s539
        $region138: #{tpu_custom_call.1} parent=129 // pred_fallthru
          _
        // Predicated region
        $region139: #{tpu_custom_call.1} parent=129 // pred_check
          %p541 = pneg %p163
        $region140: #{tpu_custom_call.1} parent=129 // pred_check_branch
          %543 = sbr.rel (%p541) target = $region142
        $region141: #{tpu_custom_call.1} parent=129 // pred_region
          %s544 = sand.u32 %s148, 1
          %s545 = scalar_lea.sflag [#allocation5], %s544
          %s546 = sand.u32 %s148, 1
          %s547 = smul.addr %s546, 2
          %s548 = scalar_lea.vmem [#allocation4], %s547
          %550 = dma.done %s545, 32
        $region142: #{tpu_custom_call.1} parent=129 // pred_fallthru
          _
      $region130: #{tpu_custom_call.1} parent=5 // pred_fallthru
        _
    $region6: #{tpu_custom_call.1} parent=1 // loop_footer
      %s18 = sadd.s32 1, %s14
    $region7: #{tpu_custom_call.1} parent=1 // loop_footer_branch
      %13 = sbr.rel target = $region3
    $region8: #{tpu_custom_call.1} parent=1 // loop_exit
      _
    %551 = vsyncpa [#allocation5], 1
    %s552 = scalar_lea.sflag [#allocation5], 1
    %553 = vsyncpa %s552, 1

</llo_original>
